<compile_context>
chip_gen: v7x
topology: tpu7x:2x2x1
jax: 0.10.0
libtpu: 0.0.40
codegen_flags: <defaults>
</compile_context>

<pallas_src>
import jax
import jax.numpy as jnp
from jax.experimental import pallas as pl
from jax.experimental.pallas import tpu as pltpu

IN_F = 12            # 3*4 board features
IN_PAD = 16          # sublane-aligned padded feature dim
H = 128              # hidden widths 100/50/10 zero-padded to one lane group


def _round_up(n, m):
    return ((n + m - 1) // m) * m


def _pad_to(a, shape):
    return jnp.pad(a, [(0, s - d) for d, s in zip(a.shape, shape)])


def ttt_mlp_kernel(x_ref,
                   w1_ref, b1_ref,
                   w2_ref, b2_ref,
                   w3_ref, b3_ref,
                   w4_ref, b4_ref,
                   o_ref):
    """Feature-major batch tile: x (IN_PAD, TB) -> o (1, TB); batch on lanes."""
    x = x_ref[...].astype(jnp.bfloat16)                                  # (16, TB)

    # Layer 1: (128,16) @ (16,TB) -- single bf16 MXU pass, f32 accumulation.
    h = jnp.dot(w1_ref[...], x, preferred_element_type=jnp.float32)
    h = jnp.maximum(h + b1_ref[...], 0.0)                                # (128, TB)

    # Layer 2: (128,128) @ (128,TB)
    h = jnp.dot(w2_ref[...], h.astype(jnp.bfloat16),
                preferred_element_type=jnp.float32)
    h = jnp.maximum(h + b2_ref[...], 0.0)

    # Layer 3: (128,128) @ (128,TB)
    h = jnp.dot(w3_ref[...], h.astype(jnp.bfloat16),
                preferred_element_type=jnp.float32)
    h = jnp.maximum(h + b3_ref[...], 0.0)

    # Layer 4: (8,128) @ (128,TB); row 0 holds the real output, so the (1,TB)
    # store is lane-dense and no transposed contraction is needed.
    z = jnp.dot(w4_ref[...], h.astype(jnp.bfloat16),
                preferred_element_type=jnp.float32)                      # (8, TB)
    o_ref[...] = jnp.tanh(z[0:1, :] + b4_ref[0, 0])                      # (1, TB)


def ttt_net_forward(x, packed_params, *, block_b=8192):
    """x: (..., 3, 4) or (B, 12). Returns (B, 1) float32."""
    x2d = x.reshape(-1, IN_F).astype(jnp.float32)
    B = x2d.shape[0]

    # Batch tile: lane-aligned, large enough to amortize per-step overhead,
    # but capped so the grid has >=4 steps (v7x: 2 TCs share the chip).
    tb_cap = _round_up(pl.cdiv(B, 4), 128)
    TB = max(128, min(block_b, tb_cap))
    B_pad = _round_up(B, TB)

    # Layout plumbing in the wrapper: pad batch + features, transpose to a
    # feature-major (16, B_pad) slab so the kernel's x block is lane-dense.
    xT = jnp.pad(x2d, ((0, B_pad - B), (0, IN_PAD - IN_F))).T            # (16, B_pad)

    w1, b1, w2, b2, w3, b3, w4, b4 = packed_params

    # Weights/biases: full-array blocks with constant index maps -> VMEM
    # resident across grid steps (~150 KiB total; double-buffer overhead is
    # negligible, so no custom pipeline_mode needed).
    const = lambda a: pl.BlockSpec(a.shape, lambda i: (0, 0))

    out_row = pl.pallas_call(
        ttt_mlp_kernel,
        out_shape=jax.ShapeDtypeStruct((1, B_pad), jnp.float32),
        grid=(B_pad // TB,),
        in_specs=[pl.BlockSpec((IN_PAD, TB), lambda i: (0, i)),
                  const(w1), const(b1),
                  const(w2), const(b2),
                  const(w3), const(b3),
                  const(w4),
                  pl.BlockSpec(memory_space=pltpu.MemorySpace.SMEM)],
        out_specs=pl.BlockSpec((1, TB), lambda i: (0, i)),
        compiler_params=pltpu.CompilerParams(
            dimension_semantics=("parallel",),
            vmem_limit_bytes=48 * 1024 * 1024),
    )(xT, w1, b1, w2, b2, w3, b3, w4, b4)

    return out_row[0, :B].reshape(B, 1)


def init_params(key):
    """nn.Linear-style init: U(-1/sqrt(fan_in), +1/sqrt(fan_in)).
    Weights stored (in_features, out_features); biases (out_features,)."""
    dims = [(12, 100), (100, 50), (50, 10), (10, 1)]
    params = []
    for fin, fout in dims:
        key, kw, kb = jax.random.split(key, 3)
        bound = 1.0 / (fin ** 0.5)
        w = jax.random.uniform(kw, (fin, fout), jnp.float32, -bound, bound)
        b = jax.random.uniform(kb, (fout,), jnp.float32, -bound, bound)
        params.append((w, b))
    return params


def pack_params(raw_params):
    """Transpose weights to (out, in), zero-pad to MXU-friendly shapes, cast
    MXU operands to bf16.  Padding is exact: padded rows/cols stay identically
    zero through the ReLUs and contribute nothing downstream."""
    (w1, b1), (w2, b2), (w3, b3), (w4, b4) = raw_params
    w1p = _pad_to(w1.T, (H, IN_PAD)).astype(jnp.bfloat16)        # (128, 16)
    b1p = _pad_to(b1.reshape(-1, 1), (H, 1)).astype(jnp.float32)  # (128, 1)
    w2p = _pad_to(w2.T, (H, H)).astype(jnp.bfloat16)             # (128, 128)
    b2p = _pad_to(b2.reshape(-1, 1), (H, 1)).astype(jnp.float32)
    w3p = _pad_to(w3.T, (H, H)).astype(jnp.bfloat16)             # (128, 128)
    b3p = _pad_to(b3.reshape(-1, 1), (H, 1)).astype(jnp.float32)
    w4p = _pad_to(w4.T, (8, H)).astype(jnp.bfloat16)             # (8, 128), row 0 real
    b4p = b4.reshape(1, 1).astype(jnp.float32)                   # scalar, SMEM
    return (w1p, b1p, w2p, b2p, w3p, b3p, w4p, b4p)


def reference_forward(x, raw_params):
    h = x.reshape(-1, IN_F).astype(jnp.float32)
    (w1, b1), (w2, b2), (w3, b3), (w4, b4) = raw_params
    h = jnp.maximum(h @ w1 + b1, 0.0)
    h = jnp.maximum(h @ w2 + b2, 0.0)
    h = jnp.maximum(h @ w3 + b3, 0.0)
    h = h @ w4 + b4
    return jnp.tanh(h)


if __name__ == "__main__":
    key = jax.random.PRNGKey(0)
    key, kx = jax.random.split(key)

    # Input shaped like the tic-tac-toe board the module implies: (B, 3, 4).
    B = 8
    x = jax.random.normal(kx, (B, 3, 4), jnp.float32)

    raw_params = init_params(key)
    packed = pack_params(raw_params)

    out = jax.block_until_ready(ttt_net_forward(x, packed))
    ref = reference_forward(x, raw_params)
    assert out.shape == (B, 1), out.shape
    err = float(jnp.max(jnp.abs(out - ref)))
    # bf16 MXU operands (f32 accumulation) -> tolerance relaxed vs pure f32.
    assert err < 3e-2, f"max abs err {err}"

    # Also exercise the multi-step pipelined grid path with a ragged batch.
    key, kx2 = jax.random.split(key)
    B2 = 300
    x2 = jax.random.normal(kx2, (B2, 3, 4), jnp.float32)
    out2 = jax.block_until_ready(ttt_net_forward(x2, packed))
    ref2 = reference_forward(x2, raw_params)
    assert out2.shape == (B2, 1), out2.shape
    err2 = float(jnp.max(jnp.abs(out2 - ref2)))
    assert err2 < 3e-2, f"max abs err {err2}"

    print("KERNEL_OK")
</pallas_src>

<mosaic_0001>
module attributes {stable_mosaic.version = 11 : i64} {
  func.func @ttt_mlp_kernel(%arg0: i32, %arg1: memref<16x128xf32, #tpu.memory_space<vmem>>, %arg2: memref<128x16xbf16, #tpu.memory_space<vmem>>, %arg3: memref<128x1xf32, #tpu.memory_space<vmem>>, %arg4: memref<128x128xbf16, #tpu.memory_space<vmem>>, %arg5: memref<128x1xf32, #tpu.memory_space<vmem>>, %arg6: memref<128x128xbf16, #tpu.memory_space<vmem>>, %arg7: memref<128x1xf32, #tpu.memory_space<vmem>>, %arg8: memref<8x128xbf16, #tpu.memory_space<vmem>>, %arg9: memref<1x1xf32, #tpu.memory_space<smem>>, %arg10: memref<1x128xf32, #tpu.memory_space<vmem>>) attributes {dimension_semantics = [#tpu.dimension_semantics<parallel>], iteration_bounds = array<i64: 1>, scalar_prefetch = 0 : i64, scratch_operands = 0 : i64, tpu.core_type = #tpu.core_type<tc>, window_params = [{transform_indices = @transform_0, window_bounds = array<i64: 16, 128>}, {pipeline_mode = #tpu.pipeline_mode<synchronous>, transform_indices = @transform_1, window_bounds = array<i64: 128, 16>}, {pipeline_mode = #tpu.pipeline_mode<synchronous>, transform_indices = @transform_2, window_bounds = array<i64: 128, 1>}, {pipeline_mode = #tpu.pipeline_mode<synchronous>, transform_indices = @transform_3, window_bounds = array<i64: 128, 128>}, {pipeline_mode = #tpu.pipeline_mode<synchronous>, transform_indices = @transform_4, window_bounds = array<i64: 128, 1>}, {pipeline_mode = #tpu.pipeline_mode<synchronous>, transform_indices = @transform_5, window_bounds = array<i64: 128, 128>}, {pipeline_mode = #tpu.pipeline_mode<synchronous>, transform_indices = @transform_6, window_bounds = array<i64: 128, 1>}, {pipeline_mode = #tpu.pipeline_mode<synchronous>, transform_indices = @transform_7, window_bounds = array<i64: 8, 128>}, {transform_indices = @transform_8, window_bounds = array<i64: 1, 1>}, {transform_indices = @transform_9, window_bounds = array<i64: 1, 128>}]} {
    %c0 = arith.constant 0 : index
    %c0_0 = arith.constant 0 : index
    %0 = vector.load %arg1[%c0, %c0_0] : memref<16x128xf32, #tpu.memory_space<vmem>>, vector<16x128xf32>
    %1 = arith.truncf %0 : vector<16x128xf32> to vector<16x128xbf16>
    %c0_1 = arith.constant 0 : index
    %c0_2 = arith.constant 0 : index
    %2 = vector.load %arg2[%c0_1, %c0_2] : memref<128x16xbf16, #tpu.memory_space<vmem>>, vector<128x16xbf16>
    %cst = arith.constant dense<0.000000e+00> : vector<128x128xf32>
    %3 = tpu.matmul %2, %1, %cst {dimension_numbers = #tpu.dot_dimension_numbers<[1], [0], [0], [1], [0, 0, 1, 1], [], []>} : vector<128x16xbf16>, vector<16x128xbf16>, vector<128x128xf32> -> vector<128x128xf32>
    %c0_3 = arith.constant 0 : index
    %c0_4 = arith.constant 0 : index
    %4 = vector.load %arg3[%c0_3, %c0_4] : memref<128x1xf32, #tpu.memory_space<vmem>>, vector<128x1xf32>
    %5 = vector.broadcast %4 : vector<128x1xf32> to vector<128x128xf32>
    %6 = arith.addf %3, %5 : vector<128x128xf32>
    %cst_5 = arith.constant 0.000000e+00 : f32
    %7 = vector.broadcast %cst_5 : f32 to vector<128x128xf32>
    %8 = arith.maximumf %6, %7 : vector<128x128xf32>
    %c0_6 = arith.constant 0 : index
    %c0_7 = arith.constant 0 : index
    %9 = vector.load %arg4[%c0_6, %c0_7] : memref<128x128xbf16, #tpu.memory_space<vmem>>, vector<128x128xbf16>
    %10 = arith.truncf %8 : vector<128x128xf32> to vector<128x128xbf16>
    %cst_8 = arith.constant dense<0.000000e+00> : vector<128x128xf32>
    %11 = tpu.matmul %9, %10, %cst_8 {dimension_numbers = #tpu.dot_dimension_numbers<[1], [0], [0], [1], [0, 0, 1, 1], [], []>} : vector<128x128xbf16>, vector<128x128xbf16>, vector<128x128xf32> -> vector<128x128xf32>
    %c0_9 = arith.constant 0 : index
    %c0_10 = arith.constant 0 : index
    %12 = vector.load %arg5[%c0_9, %c0_10] : memref<128x1xf32, #tpu.memory_space<vmem>>, vector<128x1xf32>
    %13 = vector.broadcast %12 : vector<128x1xf32> to vector<128x128xf32>
    %14 = arith.addf %11, %13 : vector<128x128xf32>
    %cst_11 = arith.constant 0.000000e+00 : f32
    %15 = vector.broadcast %cst_11 : f32 to vector<128x128xf32>
    %16 = arith.maximumf %14, %15 : vector<128x128xf32>
    %c0_12 = arith.constant 0 : index
    %c0_13 = arith.constant 0 : index
    %17 = vector.load %arg6[%c0_12, %c0_13] : memref<128x128xbf16, #tpu.memory_space<vmem>>, vector<128x128xbf16>
    %18 = arith.truncf %16 : vector<128x128xf32> to vector<128x128xbf16>
    %cst_14 = arith.constant dense<0.000000e+00> : vector<128x128xf32>
    %19 = tpu.matmul %17, %18, %cst_14 {dimension_numbers = #tpu.dot_dimension_numbers<[1], [0], [0], [1], [0, 0, 1, 1], [], []>} : vector<128x128xbf16>, vector<128x128xbf16>, vector<128x128xf32> -> vector<128x128xf32>
    %c0_15 = arith.constant 0 : index
    %c0_16 = arith.constant 0 : index
    %20 = vector.load %arg7[%c0_15, %c0_16] : memref<128x1xf32, #tpu.memory_space<vmem>>, vector<128x1xf32>
    %21 = vector.broadcast %20 : vector<128x1xf32> to vector<128x128xf32>
    %22 = arith.addf %19, %21 : vector<128x128xf32>
    %cst_17 = arith.constant 0.000000e+00 : f32
    %23 = vector.broadcast %cst_17 : f32 to vector<128x128xf32>
    %24 = arith.maximumf %22, %23 : vector<128x128xf32>
    %c0_18 = arith.constant 0 : index
    %c0_19 = arith.constant 0 : index
    %25 = vector.load %arg8[%c0_18, %c0_19] : memref<8x128xbf16, #tpu.memory_space<vmem>>, vector<8x128xbf16>
    %26 = arith.truncf %24 : vector<128x128xf32> to vector<128x128xbf16>
    %cst_20 = arith.constant dense<0.000000e+00> : vector<8x128xf32>
    %27 = tpu.matmul %25, %26, %cst_20 {dimension_numbers = #tpu.dot_dimension_numbers<[1], [0], [0], [1], [0, 0, 1, 1], [], []>} : vector<8x128xbf16>, vector<128x128xbf16>, vector<8x128xf32> -> vector<8x128xf32>
    %28 = vector.extract_strided_slice %27 {offsets = [0, 0], sizes = [1, 128], strides = [1, 1]} : vector<8x128xf32> to vector<1x128xf32>
    %c0_21 = arith.constant 0 : index
    %c0_22 = arith.constant 0 : index
    %29 = memref.load %arg9[%c0_21, %c0_22] : memref<1x1xf32, #tpu.memory_space<smem>>
    %30 = vector.broadcast %29 : f32 to vector<1x128xf32>
    %31 = arith.addf %28, %30 : vector<1x128xf32>
    %32 = math.tanh %31 : vector<1x128xf32>
    %c0_23 = arith.constant 0 : index
    %c0_24 = arith.constant 0 : index
    %33 = vector.load %arg10[%c0_23, %c0_24] : memref<1x128xf32, #tpu.memory_space<vmem>>, vector<1x128xf32>
    tpu.vector_store %arg10[%c0_23, %c0_24], %32 {strides = array<i32>} : memref<1x128xf32, #tpu.memory_space<vmem>>, vector<1x128xf32>,
    return
  }
  func.func @transform_0(%arg0: i32) -> (i32, i32) {
    %c0_i32 = arith.constant 0 : i32
    %c0_i32_0 = arith.constant 0 : i32
    return %c0_i32, %arg0 : i32, i32
  }
  func.func @transform_1(%arg0: i32) -> (i32, i32) {
    %c0_i32 = arith.constant 0 : i32
    %c0_i32_0 = arith.constant 0 : i32
    %c0_i32_1 = arith.constant 0 : i32
    return %c0_i32, %c0_i32_0 : i32, i32
  }
  func.func @transform_2(%arg0: i32) -> (i32, i32) {
    %c0_i32 = arith.constant 0 : i32
    %c0_i32_0 = arith.constant 0 : i32
    %c0_i32_1 = arith.constant 0 : i32
    return %c0_i32, %c0_i32_0 : i32, i32
  }
  func.func @transform_3(%arg0: i32) -> (i32, i32) {
    %c0_i32 = arith.constant 0 : i32
    %c0_i32_0 = arith.constant 0 : i32
    %c0_i32_1 = arith.constant 0 : i32
    return %c0_i32, %c0_i32_0 : i32, i32
  }
  func.func @transform_4(%arg0: i32) -> (i32, i32) {
    %c0_i32 = arith.constant 0 : i32
    %c0_i32_0 = arith.constant 0 : i32
    %c0_i32_1 = arith.constant 0 : i32
    return %c0_i32, %c0_i32_0 : i32, i32
  }
  func.func @transform_5(%arg0: i32) -> (i32, i32) {
    %c0_i32 = arith.constant 0 : i32
    %c0_i32_0 = arith.constant 0 : i32
    %c0_i32_1 = arith.constant 0 : i32
    return %c0_i32, %c0_i32_0 : i32, i32
  }
  func.func @transform_6(%arg0: i32) -> (i32, i32) {
    %c0_i32 = arith.constant 0 : i32
    %c0_i32_0 = arith.constant 0 : i32
    %c0_i32_1 = arith.constant 0 : i32
    return %c0_i32, %c0_i32_0 : i32, i32
  }
  func.func @transform_7(%arg0: i32) -> (i32, i32) {
    %c0_i32 = arith.constant 0 : i32
    %c0_i32_0 = arith.constant 0 : i32
    %c0_i32_1 = arith.constant 0 : i32
    return %c0_i32, %c0_i32_0 : i32, i32
  }
  func.func @transform_8(%arg0: i32) -> (i32, i32) {
    %c0_i32 = arith.constant 0 : i32
    %c0_i32_0 = arith.constant 0 : i32
    %c0_i32_1 = arith.constant 0 : i32
    return %c0_i32, %c0_i32_0 : i32, i32
  }
  func.func @transform_9(%arg0: i32) -> (i32, i32) {
    %c0_i32 = arith.constant 0 : i32
    %c0_i32_0 = arith.constant 0 : i32
    return %c0_i32, %arg0 : i32, i32
  }
}

</mosaic_0001>

<llo_original>
// kernel: tpu_custom_call.1
$region0: #{tpu_custom_call.1}
  #allocation0 [shape = 'u32[]', space=smem, size = 0x4, offset = 0x4, fixed_abs, tag = 'smem constant byte address 0x4 - core index']
  #allocation1 [shape = 'u32[144,128]{1,0:T(1,128)}', space=vmem, size = 0x12000, scoped, tag = 'internal scratch']
  #allocation2 [shape = 'f32[1,1]{1,0:T(1,128)S(6)}', space=smem, size = 0x200, scoped, tag = 'scoped memory for tpu_custom_call.1']
  %s0 = inlined_call_operand.vmem [shape: f32[16,128], index: 0, kind: input, shape index: {}]
  %s1 = inlined_call_operand.vmem [shape: bf16[128,16], index: 1, kind: input, shape index: {}]
  %s2 = inlined_call_operand.vmem [shape: f32[128,1], index: 2, kind: input, shape index: {}]
  %s3 = inlined_call_operand.vmem [shape: bf16[128,128], index: 3, kind: input, shape index: {}]
  %s4 = inlined_call_operand.vmem [shape: f32[128,1], index: 4, kind: input, shape index: {}]
  %s5 = inlined_call_operand.vmem [shape: bf16[128,128], index: 5, kind: input, shape index: {}]
  %s6 = inlined_call_operand.vmem [shape: f32[128,1], index: 6, kind: input, shape index: {}]
  %s7 = inlined_call_operand.vmem [shape: bf16[8,128], index: 7, kind: input, shape index: {}]
  %s8 = inlined_call_operand.<no memory space> [shape: f32[1,1], index: 8, kind: input, shape index: {}]
  %s9 = inlined_call_operand.hbm [shape: f32[1,128], index: 9, kind: output, shape index: {}]
  %s10 = sld [smem:[#allocation0]]
  $region46: #{tpu_custom_call.1} parent=0
    _
  %s12 = ssub.s32 1, %s10
  %s13 = scalar_select 0, %s12, %s10
  %14 = sst [smem:[#allocation2]] %s8
  $region1: #{tpu_custom_call.1} parent=0
    #allocation3 [shape = 'u8[512]{0}', space=vmem, size = 0x400, scoped, tag = 'output window, operand 0, single buffered']
    #allocation4 [shape = 's32[1]{0}', space=sflag, size = 0x4, scoped, tag = 'scoped memory for tpu_custom_call.1']
    %15 = vsyncpa [#allocation4], 0
    // Predicated region
    $region2: #{tpu_custom_call.1} parent=1 // pred_check
      _
    $region3: #{tpu_custom_call.1} parent=1 // pred_check_branch
      %17 = sbr.rel (0) target = $region5
    $region4: #{tpu_custom_call.1} parent=1 // pred_region
      _
    $region5: #{tpu_custom_call.1} parent=1 // pred_fallthru
      _
    // Predicated region
    $region6: #{tpu_custom_call.1} parent=1 // pred_check
      _
    $region7: #{tpu_custom_call.1} parent=1 // pred_check_branch
      %19 = sbr.rel (0) target = $region9
    $region8: #{tpu_custom_call.1} parent=1 // pred_region
      _
    $region9: #{tpu_custom_call.1} parent=1 // pred_fallthru
      _
    // Predicated region
    $region10: #{tpu_custom_call.1} parent=1 // pred_check
      _
    $region11: #{tpu_custom_call.1} parent=1 // pred_check_branch
      %21 = sbr.rel (0) target = $region13
    $region12: #{tpu_custom_call.1} parent=1 // pred_region
      _
    $region13: #{tpu_custom_call.1} parent=1 // pred_fallthru
      _
    // Predicated region
    $region14: #{tpu_custom_call.1} parent=1 // pred_check
      _
    $region15: #{tpu_custom_call.1} parent=1 // pred_check_branch
      %23 = sbr.rel (0) target = $region17
    $region16: #{tpu_custom_call.1} parent=1 // pred_region
      _
    $region17: #{tpu_custom_call.1} parent=1 // pred_fallthru
      _
    // Predicated region
    $region18: #{tpu_custom_call.1} parent=1 // pred_check
      _
    $region19: #{tpu_custom_call.1} parent=1 // pred_check_branch
      %25 = sbr.rel (0) target = $region21
    $region20: #{tpu_custom_call.1} parent=1 // pred_region
      _
    $region21: #{tpu_custom_call.1} parent=1 // pred_fallthru
      _
    // Predicated region
    $region22: #{tpu_custom_call.1} parent=1 // pred_check
      _
    $region23: #{tpu_custom_call.1} parent=1 // pred_check_branch
      %27 = sbr.rel (0) target = $region25
    $region24: #{tpu_custom_call.1} parent=1 // pred_region
      _
    $region25: #{tpu_custom_call.1} parent=1 // pred_fallthru
      _
    // Predicated region
    $region26: #{tpu_custom_call.1} parent=1 // pred_check
      _
    $region27: #{tpu_custom_call.1} parent=1 // pred_check_branch
      %29 = sbr.rel (0) target = $region29
    $region28: #{tpu_custom_call.1} parent=1 // pred_region
      _
    $region29: #{tpu_custom_call.1} parent=1 // pred_fallthru
      _
    // Predicated region
    $region30: #{tpu_custom_call.1} parent=1 // pred_check
      _
    $region31: #{tpu_custom_call.1} parent=1 // pred_check_branch
      %31 = sbr.rel (0) target = $region33
    $region32: #{tpu_custom_call.1} parent=1 // pred_region
      _
    $region33: #{tpu_custom_call.1} parent=1 // pred_fallthru
      _
    // Predicated region
    $region34: #{tpu_custom_call.1} parent=1 // pred_check
      _
    $region35: #{tpu_custom_call.1} parent=1 // pred_check_branch
      %33 = sbr.rel (0) target = $region37
    $region36: #{tpu_custom_call.1} parent=1 // pred_region
      _
    $region37: #{tpu_custom_call.1} parent=1 // pred_fallthru
      _
    %v35 = vld [vmem:[%s0] sm:$0xff]
    %v36 = vld [vmem:[%s0 + $0x8] sm:$0xff]
    %v37 = vpack.c.bf16 %v36, %v35
    %v38 = vld [vmem:[%s1] sm:$0xf]
    %v39 = vld [vmem:[%s1 + $0x4] sm:$0xf]
    %v40 = vld [vmem:[%s1 + $0x8] sm:$0xf]
    %v41 = vld [vmem:[%s1 + $0xc] sm:$0xf]
    %v42 = vld [vmem:[%s1 + $0x10] sm:$0xf]
    %v43 = vld [vmem:[%s1 + $0x14] sm:$0xf]
    %v44 = vld [vmem:[%s1 + $0x18] sm:$0xf]
    %v45 = vld [vmem:[%s1 + $0x1c] sm:$0xf]
    %v46 = vld [vmem:[%s1 + $0x20] sm:$0xf]
    %v47 = vld [vmem:[%s1 + $0x24] sm:$0xf]
    %v48 = vld [vmem:[%s1 + $0x28] sm:$0xf]
    %v49 = vld [vmem:[%s1 + $0x2c] sm:$0xf]
    %v50 = vld [vmem:[%s1 + $0x30] sm:$0xf]
    %v51 = vld [vmem:[%s1 + $0x34] sm:$0xf]
    %v52 = vld [vmem:[%s1 + $0x38] sm:$0xf]
    %v53 = vld [vmem:[%s1 + $0x3c] sm:$0xf]
    %v54 = vld [vmem:[%s2] sm:$0xff]
    %v55 = vld [vmem:[%s2 + $0x8] sm:$0xff]
    %v56 = vld [vmem:[%s2 + $0x10] sm:$0xff]
    %v57 = vld [vmem:[%s2 + $0x18] sm:$0xff]
    %v58 = vld [vmem:[%s2 + $0x20] sm:$0xff]
    %v59 = vld [vmem:[%s2 + $0x28] sm:$0xff]
    %v60 = vld [vmem:[%s2 + $0x30] sm:$0xff]
    %v61 = vld [vmem:[%s2 + $0x38] sm:$0xff]
    %v62 = vld [vmem:[%s2 + $0x40] sm:$0xff]
    %v63 = vld [vmem:[%s2 + $0x48] sm:$0xff]
    %v64 = vld [vmem:[%s2 + $0x50] sm:$0xff]
    %v65 = vld [vmem:[%s2 + $0x58] sm:$0xff]
    %v66 = vld [vmem:[%s2 + $0x60] sm:$0xff]
    %v67 = vld [vmem:[%s2 + $0x68] sm:$0xff]
    %v68 = vld [vmem:[%s2 + $0x70] sm:$0xff]
    %v69 = vld [vmem:[%s2 + $0x78] sm:$0xff]
    %71 = vset.pattern.permute.xlu0 0
    %72 = vperm.xlu0 %71, %v54
    %v73 = vpop.permute.xlu0 %72
    %76 = vset.pattern.permute.xlu0 0
    %77 = vperm.xlu0 %76, %v55
    %v78 = vpop.permute.xlu0 %77
    %81 = vset.pattern.permute.xlu0 0
    %82 = vperm.xlu0 %81, %v56
    %v83 = vpop.permute.xlu0 %82
    %86 = vset.pattern.permute.xlu0 0
    %87 = vperm.xlu0 %86, %v57
    %v88 = vpop.permute.xlu0 %87
    %91 = vset.pattern.permute.xlu0 0
    %92 = vperm.xlu0 %91, %v58
    %v93 = vpop.permute.xlu0 %92
    %96 = vset.pattern.permute.xlu0 0
    %97 = vperm.xlu0 %96, %v59
    %v98 = vpop.permute.xlu0 %97
    %101 = vset.pattern.permute.xlu0 0
    %102 = vperm.xlu0 %101, %v60
    %v103 = vpop.permute.xlu0 %102
    %106 = vset.pattern.permute.xlu0 0
    %107 = vperm.xlu0 %106, %v61
    %v108 = vpop.permute.xlu0 %107
    %111 = vset.pattern.permute.xlu0 0
    %112 = vperm.xlu0 %111, %v62
    %v113 = vpop.permute.xlu0 %112
    %116 = vset.pattern.permute.xlu0 0
    %117 = vperm.xlu0 %116, %v63
    %v118 = vpop.permute.xlu0 %117
    %121 = vset.pattern.permute.xlu0 0
    %122 = vperm.xlu0 %121, %v64
    %v123 = vpop.permute.xlu0 %122
    %126 = vset.pattern.permute.xlu0 0
    %127 = vperm.xlu0 %126, %v65
    %v128 = vpop.permute.xlu0 %127
    %131 = vset.pattern.permute.xlu0 0
    %132 = vperm.xlu0 %131, %v66
    %v133 = vpop.permute.xlu0 %132
    %136 = vset.pattern.permute.xlu0 0
    %137 = vperm.xlu0 %136, %v67
    %v138 = vpop.permute.xlu0 %137
    %141 = vset.pattern.permute.xlu0 0
    %142 = vperm.xlu0 %141, %v68
    %v143 = vpop.permute.xlu0 %142
    %146 = vset.pattern.permute.xlu0 0
    %147 = vperm.xlu0 %146, %v69
    %v148 = vpop.permute.xlu0 %147
    %v166 = vunpack.c.l.b16 %v38
    %v167 = vunpack.c.l.b16 %v39
    %v168 = vunpack.c.l.b16 %v40
    %v169 = vunpack.c.l.b16 %v41
    %v170 = vunpack.c.l.b16 %v42
    %v171 = vunpack.c.l.b16 %v43
    %v172 = vunpack.c.l.b16 %v44
    %v173 = vunpack.c.l.b16 %v45
    %v174 = vunpack.c.l.b16 %v46
    %v175 = vunpack.c.l.b16 %v47
    %v176 = vunpack.c.l.b16 %v48
    %v177 = vunpack.c.l.b16 %v49
    %v178 = vunpack.c.l.b16 %v50
    %v179 = vunpack.c.l.b16 %v51
    %v180 = vunpack.c.l.b16 %v52
    %v181 = vunpack.c.l.b16 %v53
    %v182 = vpack.c.b16 %v167, %v166
    %v183 = vpack.c.b16 %v169, %v168
    %v184 = vpack.c.b16 %v171, %v170
    %v185 = vpack.c.b16 %v173, %v172
    %v186 = vpack.c.b16 %v175, %v174
    %v187 = vpack.c.b16 %v177, %v176
    %v188 = vpack.c.b16 %v179, %v178
    %v189 = vpack.c.b16 %v181, %v180
    %vm190 = vcmask 130048
    %v192 = vsel %vm190, %v182, 0
    %v195 = vsel %vm190, %v183, 0
    %v198 = vsel %vm190, %v184, 0
    %v201 = vsel %vm190, %v185, 0
    %v204 = vsel %vm190, %v186, 0
    %v207 = vsel %vm190, %v187, 0
    %v210 = vsel %vm190, %v188, 0
    %v213 = vsel %vm190, %v189, 0
    %215 = vmatprep.subr.bf16.mxu0 0
    %216 = vmatpush1.bf16.msra.mxu0 %v37
    %217 = vmatprep.subr.bf16.mxu0 0
    %218 = vmatpush1.bf16.msra.mxu0 0
    %219 = vmatprep.subr.bf16.mxu0 0
    %220 = vmatpush1.bf16.msra.mxu0 0
    %221 = vmatprep.subr.bf16.mxu0 0
    %222 = vmatpush1.bf16.msra.mxu0 0
    %223 = vmatprep.subr.bf16.mxu0 0
    %224 = vmatpush1.bf16.msra.mxu0 0
    %225 = vmatprep.subr.bf16.mxu0 0
    %226 = vmatpush1.bf16.msra.mxu0 0
    %227 = vmatprep.subr.bf16.mxu0 0
    %228 = vmatpush1.bf16.msra.mxu0 0
    %229 = vmatprep.subr.bf16.mxu0 0
    %230 = vmatpush1.bf16.msra.mxu0 0
    %231 = vmatprep.subr.bf16.mxu0 0
    %232 = vmatpush1.bf16.msra.mxu0 0
    %233 = vmatprep.subr.bf16.mxu0 0
    %234 = vmatpush1.bf16.msra.mxu0 0
    %235 = vmatprep.subr.bf16.mxu0 0
    %236 = vmatpush1.bf16.msra.mxu0 0
    %237 = vmatprep.subr.bf16.mxu0 0
    %238 = vmatpush1.bf16.msra.mxu0 0
    %239 = vmatprep.subr.bf16.mxu0 0
    %240 = vmatpush1.bf16.msra.mxu0 0
    %241 = vmatprep.subr.bf16.mxu0 0
    %242 = vmatpush1.bf16.msra.mxu0 0
    %243 = vmatprep.subr.bf16.mxu0 0
    %244 = vmatpush1.bf16.msra.mxu0 0
    %245 = vmatprep.subr.bf16.mxu0 0
    %246 = vmatpush1.bf16.msra.mxu0 0
    %247 = vmatprep.mubr.bf16.mxu0 0
    %248 = vmatmul.mubr.bf16.gmra.mrb[0].mxu0 %v192
    %v249 = vpop.f32.mrb[0].mxu0
    %v250 = vadd.f32 %v73, %v249
    %v251 = vpop.f32.mrb[0].mxu0
    %v252 = vpop.f32.mrb[0].mxu0
    %v253 = vadd.f32 %v78, %v252
    %v254 = vpop.f32.mrb[0].mxu0
    %255 = vmatprep.mubr.bf16.mxu0 0
    %256 = vmatmul.mubr.bf16.gmra.mrb[0].mxu0 %v195
    %v257 = vpop.f32.mrb[0].mxu0
    %v258 = vadd.f32 %v83, %v257
    %v259 = vpop.f32.mrb[0].mxu0
    %v260 = vpop.f32.mrb[0].mxu0
    %v261 = vadd.f32 %v88, %v260
    %v262 = vpop.f32.mrb[0].mxu0
    %263 = vmatprep.mubr.bf16.mxu0 0
    %264 = vmatmul.mubr.bf16.gmra.mrb[0].mxu0 %v198
    %v265 = vpop.f32.mrb[0].mxu0
    %v266 = vadd.f32 %v93, %v265
    %v267 = vpop.f32.mrb[0].mxu0
    %v268 = vpop.f32.mrb[0].mxu0
    %v269 = vadd.f32 %v98, %v268
    %v270 = vpop.f32.mrb[0].mxu0
    %271 = vmatprep.mubr.bf16.mxu0 0
    %272 = vmatmul.mubr.bf16.gmra.mrb[0].mxu0 %v201
    %v273 = vpop.f32.mrb[0].mxu0
    %v274 = vadd.f32 %v103, %v273
    %v275 = vpop.f32.mrb[0].mxu0
    %v276 = vpop.f32.mrb[0].mxu0
    %v277 = vadd.f32 %v108, %v276
    %v278 = vpop.f32.mrb[0].mxu0
    %279 = vmatprep.mubr.bf16.mxu0 0
    %280 = vmatmul.mubr.bf16.gmra.mrb[0].mxu0 %v204
    %v281 = vpop.f32.mrb[0].mxu0
    %v282 = vadd.f32 %v113, %v281
    %v283 = vpop.f32.mrb[0].mxu0
    %v284 = vpop.f32.mrb[0].mxu0
    %v285 = vadd.f32 %v118, %v284
    %v286 = vpop.f32.mrb[0].mxu0
    %287 = vmatprep.mubr.bf16.mxu0 0
    %288 = vmatmul.mubr.bf16.gmra.mrb[0].mxu0 %v207
    %v289 = vpop.f32.mrb[0].mxu0
    %v290 = vadd.f32 %v123, %v289
    %v291 = vpop.f32.mrb[0].mxu0
    %v292 = vpop.f32.mrb[0].mxu0
    %v293 = vadd.f32 %v128, %v292
    %v294 = vpop.f32.mrb[0].mxu0
    %295 = vmatprep.mubr.bf16.mxu0 0
    %296 = vmatmul.mubr.bf16.gmra.mrb[0].mxu0 %v210
    %v297 = vpop.f32.mrb[0].mxu0
    %v298 = vadd.f32 %v133, %v297
    %v299 = vpop.f32.mrb[0].mxu0
    %v300 = vpop.f32.mrb[0].mxu0
    %v301 = vadd.f32 %v138, %v300
    %v302 = vpop.f32.mrb[0].mxu0
    %303 = vmatprep.mubr.bf16.mxu0 0
    %304 = vmatmul.mubr.bf16.gmra.mrb[0].mxu0 %v213
    %v305 = vpop.f32.mrb[0].mxu0
    %v306 = vadd.f32 %v143, %v305
    %v307 = vpop.f32.mrb[0].mxu0
    %v308 = vpop.f32.mrb[0].mxu0
    %v309 = vadd.f32 %v148, %v308
    %v310 = vpop.f32.mrb[0].mxu0
    %311 = vdwg.mxu0
    %v312 = vmax.f32 %v250, 0.0
    %v313 = vmax.f32 %v253, 0.0
    %v314 = vmax.f32 %v258, 0.0
    %v315 = vmax.f32 %v261, 0.0
    %v316 = vmax.f32 %v266, 0.0
    %v317 = vmax.f32 %v269, 0.0
    %v318 = vmax.f32 %v274, 0.0
    %v319 = vmax.f32 %v277, 0.0
    %v320 = vmax.f32 %v282, 0.0
    %v321 = vmax.f32 %v285, 0.0
    %v322 = vmax.f32 %v290, 0.0
    %v323 = vmax.f32 %v293, 0.0
    %v324 = vmax.f32 %v298, 0.0
    %v325 = vmax.f32 %v301, 0.0
    %v326 = vmax.f32 %v306, 0.0
    %v327 = vmax.f32 %v309, 0.0
    %v328 = vld [vmem:[%s3] sm:$0xf]
    %v329 = vld [vmem:[%s3 + $0x4] sm:$0xf]
    %v330 = vld [vmem:[%s3 + $0x8] sm:$0xf]
    %v331 = vld [vmem:[%s3 + $0xc] sm:$0xf]
    %v332 = vld [vmem:[%s3 + $0x10] sm:$0xf]
    %v333 = vld [vmem:[%s3 + $0x14] sm:$0xf]
    %v334 = vld [vmem:[%s3 + $0x18] sm:$0xf]
    %v335 = vld [vmem:[%s3 + $0x1c] sm:$0xf]
    %v336 = vld [vmem:[%s3 + $0x20] sm:$0xf]
    %v337 = vld [vmem:[%s3 + $0x24] sm:$0xf]
    %v338 = vld [vmem:[%s3 + $0x28] sm:$0xf]
    %v339 = vld [vmem:[%s3 + $0x2c] sm:$0xf]
    %v340 = vld [vmem:[%s3 + $0x30] sm:$0xf]
    %v341 = vld [vmem:[%s3 + $0x34] sm:$0xf]
    %v342 = vld [vmem:[%s3 + $0x38] sm:$0xf]
    %v343 = vld [vmem:[%s3 + $0x3c] sm:$0xf]
    %v344 = vpack.c.bf16 %v313, %v312
    %v345 = vpack.c.bf16 %v315, %v314
    %v346 = vpack.c.bf16 %v317, %v316
    %v347 = vpack.c.bf16 %v319, %v318
    %v348 = vpack.c.bf16 %v321, %v320
    %v349 = vpack.c.bf16 %v323, %v322
    %v350 = vpack.c.bf16 %v325, %v324
    %v351 = vpack.c.bf16 %v327, %v326
    %v352 = vld [vmem:[%s4] sm:$0xff]
    %v353 = vld [vmem:[%s4 + $0x8] sm:$0xff]
    %v354 = vld [vmem:[%s4 + $0x10] sm:$0xff]
    %v355 = vld [vmem:[%s4 + $0x18] sm:$0xff]
    %v356 = vld [vmem:[%s4 + $0x20] sm:$0xff]
    %v357 = vld [vmem:[%s4 + $0x28] sm:$0xff]
    %v358 = vld [vmem:[%s4 + $0x30] sm:$0xff]
    %v359 = vld [vmem:[%s4 + $0x38] sm:$0xff]
    %v360 = vld [vmem:[%s4 + $0x40] sm:$0xff]
    %v361 = vld [vmem:[%s4 + $0x48] sm:$0xff]
    %v362 = vld [vmem:[%s4 + $0x50] sm:$0xff]
    %v363 = vld [vmem:[%s4 + $0x58] sm:$0xff]
    %v364 = vld [vmem:[%s4 + $0x60] sm:$0xff]
    %v365 = vld [vmem:[%s4 + $0x68] sm:$0xff]
    %v366 = vld [vmem:[%s4 + $0x70] sm:$0xff]
    %v367 = vld [vmem:[%s4 + $0x78] sm:$0xff]
    %369 = vset.pattern.permute.xlu0 0
    %370 = vperm.xlu0 %369, %v352
    %v371 = vpop.permute.xlu0 %370
    %374 = vset.pattern.permute.xlu0 0
    %375 = vperm.xlu0 %374, %v353
    %v376 = vpop.permute.xlu0 %375
    %379 = vset.pattern.permute.xlu0 0
    %380 = vperm.xlu0 %379, %v354
    %v381 = vpop.permute.xlu0 %380
    %384 = vset.pattern.permute.xlu0 0
    %385 = vperm.xlu0 %384, %v355
    %v386 = vpop.permute.xlu0 %385
    %389 = vset.pattern.permute.xlu0 0
    %390 = vperm.xlu0 %389, %v356
    %v391 = vpop.permute.xlu0 %390
    %394 = vset.pattern.permute.xlu0 0
    %395 = vperm.xlu0 %394, %v357
    %v396 = vpop.permute.xlu0 %395
    %399 = vset.pattern.permute.xlu0 0
    %400 = vperm.xlu0 %399, %v358
    %v401 = vpop.permute.xlu0 %400
    %404 = vset.pattern.permute.xlu0 0
    %405 = vperm.xlu0 %404, %v359
    %v406 = vpop.permute.xlu0 %405
    %409 = vset.pattern.permute.xlu0 0
    %410 = vperm.xlu0 %409, %v360
    %v411 = vpop.permute.xlu0 %410
    %414 = vset.pattern.permute.xlu0 0
    %415 = vperm.xlu0 %414, %v361
    %v416 = vpop.permute.xlu0 %415
    %419 = vset.pattern.permute.xlu0 0
    %420 = vperm.xlu0 %419, %v362
    %v421 = vpop.permute.xlu0 %420
    %424 = vset.pattern.permute.xlu0 0
    %425 = vperm.xlu0 %424, %v363
    %v426 = vpop.permute.xlu0 %425
    %429 = vset.pattern.permute.xlu0 0
    %430 = vperm.xlu0 %429, %v364
    %v431 = vpop.permute.xlu0 %430
    %434 = vset.pattern.permute.xlu0 0
    %435 = vperm.xlu0 %434, %v365
    %v436 = vpop.permute.xlu0 %435
    %439 = vset.pattern.permute.xlu0 0
    %440 = vperm.xlu0 %439, %v366
    %v441 = vpop.permute.xlu0 %440
    %444 = vset.pattern.permute.xlu0 0
    %445 = vperm.xlu0 %444, %v367
    %v446 = vpop.permute.xlu0 %445
    %v464 = vunpack.c.l.b16 %v328
    %v465 = vunpack.c.l.b16 %v329
    %v466 = vunpack.c.l.b16 %v330
    %v467 = vunpack.c.l.b16 %v331
    %v468 = vunpack.c.l.b16 %v332
    %v469 = vunpack.c.l.b16 %v333
    %v470 = vunpack.c.l.b16 %v334
    %v471 = vunpack.c.l.b16 %v335
    %v472 = vunpack.c.l.b16 %v336
    %v473 = vunpack.c.l.b16 %v337
    %v474 = vunpack.c.l.b16 %v338
    %v475 = vunpack.c.l.b16 %v339
    %v476 = vunpack.c.l.b16 %v340
    %v477 = vunpack.c.l.b16 %v341
    %v478 = vunpack.c.l.b16 %v342
    %v479 = vunpack.c.l.b16 %v343
    %v480 = vpack.c.b16 %v465, %v464
    %v481 = vpack.c.b16 %v467, %v466
    %v482 = vpack.c.b16 %v469, %v468
    %v483 = vpack.c.b16 %v471, %v470
    %v484 = vpack.c.b16 %v473, %v472
    %v485 = vpack.c.b16 %v475, %v474
    %v486 = vpack.c.b16 %v477, %v476
    %v487 = vpack.c.b16 %v479, %v478
    %496 = vmatprep.subr.bf16.mxu0 0
    %497 = vmatpush1.bf16.msra.mxu0 %v344
    %498 = vmatprep.subr.bf16.mxu0 0
    %499 = vmatpush1.bf16.msra.mxu0 %v345
    %500 = vmatprep.subr.bf16.mxu0 0
    %501 = vmatpush1.bf16.msra.mxu0 %v346
    %502 = vmatprep.subr.bf16.mxu0 0
    %503 = vmatpush1.bf16.msra.mxu0 %v347
    %504 = vmatprep.subr.bf16.mxu0 0
    %505 = vmatpush1.bf16.msra.mxu0 %v348
    %506 = vmatprep.subr.bf16.mxu0 0
    %507 = vmatpush1.bf16.msra.mxu0 %v349
    %508 = vmatprep.subr.bf16.mxu0 0
    %509 = vmatpush1.bf16.msra.mxu0 %v350
    %510 = vmatprep.subr.bf16.mxu0 0
    %511 = vmatpush1.bf16.msra.mxu0 %v351
    %512 = vmatprep.subr.bf16.mxu0 0
    %513 = vmatpush1.bf16.msra.mxu0 0
    %514 = vmatprep.subr.bf16.mxu0 0
    %515 = vmatpush1.bf16.msra.mxu0 0
    %516 = vmatprep.subr.bf16.mxu0 0
    %517 = vmatpush1.bf16.msra.mxu0 0
    %518 = vmatprep.subr.bf16.mxu0 0
    %519 = vmatpush1.bf16.msra.mxu0 0
    %520 = vmatprep.subr.bf16.mxu0 0
    %521 = vmatpush1.bf16.msra.mxu0 0
    %522 = vmatprep.subr.bf16.mxu0 0
    %523 = vmatpush1.bf16.msra.mxu0 0
    %524 = vmatprep.subr.bf16.mxu0 0
    %525 = vmatpush1.bf16.msra.mxu0 0
    %526 = vmatprep.subr.bf16.mxu0 0
    %527 = vmatpush1.bf16.msra.mxu0 0
    %528 = vmatprep.mubr.bf16.mxu0 0
    %529 = vmatmul.mubr.bf16.gmra.mrb[0].mxu0 %v480
    %v530 = vpop.f32.mrb[0].mxu0
    %v531 = vadd.f32 %v371, %v530
    %v532 = vpop.f32.mrb[0].mxu0
    %v533 = vpop.f32.mrb[0].mxu0
    %v534 = vadd.f32 %v376, %v533
    %v535 = vpop.f32.mrb[0].mxu0
    %536 = vmatprep.mubr.bf16.mxu0 0
    %537 = vmatmul.mubr.bf16.gmra.mrb[0].mxu0 %v481
    %v538 = vpop.f32.mrb[0].mxu0
    %v539 = vadd.f32 %v381, %v538
    %v540 = vpop.f32.mrb[0].mxu0
    %v541 = vpop.f32.mrb[0].mxu0
    %v542 = vadd.f32 %v386, %v541
    %v543 = vpop.f32.mrb[0].mxu0
    %544 = vmatprep.mubr.bf16.mxu0 0
    %545 = vmatmul.mubr.bf16.gmra.mrb[0].mxu0 %v482
    %v546 = vpop.f32.mrb[0].mxu0
    %v547 = vadd.f32 %v391, %v546
    %v548 = vpop.f32.mrb[0].mxu0
    %v549 = vpop.f32.mrb[0].mxu0
    %v550 = vadd.f32 %v396, %v549
    %v551 = vpop.f32.mrb[0].mxu0
    %552 = vmatprep.mubr.bf16.mxu0 0
    %553 = vmatmul.mubr.bf16.gmra.mrb[0].mxu0 %v483
    %v554 = vpop.f32.mrb[0].mxu0
    %v555 = vadd.f32 %v401, %v554
    %v556 = vpop.f32.mrb[0].mxu0
    %v557 = vpop.f32.mrb[0].mxu0
    %v558 = vadd.f32 %v406, %v557
    %v559 = vpop.f32.mrb[0].mxu0
    %560 = vmatprep.mubr.bf16.mxu0 0
    %561 = vmatmul.mubr.bf16.gmra.mrb[0].mxu0 %v484
    %v562 = vpop.f32.mrb[0].mxu0
    %v563 = vadd.f32 %v411, %v562
    %v564 = vpop.f32.mrb[0].mxu0
    %v565 = vpop.f32.mrb[0].mxu0
    %v566 = vadd.f32 %v416, %v565
    %v567 = vpop.f32.mrb[0].mxu0
    %568 = vmatprep.mubr.bf16.mxu0 0
    %569 = vmatmul.mubr.bf16.gmra.mrb[0].mxu0 %v485
    %v570 = vpop.f32.mrb[0].mxu0
    %v571 = vadd.f32 %v421, %v570
    %v572 = vpop.f32.mrb[0].mxu0
    %v573 = vpop.f32.mrb[0].mxu0
    %v574 = vadd.f32 %v426, %v573
    %v575 = vpop.f32.mrb[0].mxu0
    %576 = vmatprep.mubr.bf16.mxu0 0
    %577 = vmatmul.mubr.bf16.gmra.mrb[0].mxu0 %v486
    %v578 = vpop.f32.mrb[0].mxu0
    %v579 = vadd.f32 %v431, %v578
    %v580 = vpop.f32.mrb[0].mxu0
    %v581 = vpop.f32.mrb[0].mxu0
    %v582 = vadd.f32 %v436, %v581
    %v583 = vpop.f32.mrb[0].mxu0
    %584 = vmatprep.mubr.bf16.mxu0 0
    %585 = vmatmul.mubr.bf16.gmra.mrb[0].mxu0 %v487
    %v586 = vpop.f32.mrb[0].mxu0
    %v587 = vadd.f32 %v441, %v586
    %v588 = vpop.f32.mrb[0].mxu0
    %v589 = vpop.f32.mrb[0].mxu0
    %v590 = vadd.f32 %v446, %v589
    %v591 = vpop.f32.mrb[0].mxu0
    %592 = vdwg.mxu0
    %v593 = vmax.f32 %v531, 0.0
    %v594 = vmax.f32 %v534, 0.0
    %v595 = vmax.f32 %v539, 0.0
    %v596 = vmax.f32 %v542, 0.0
    %v597 = vmax.f32 %v547, 0.0
    %v598 = vmax.f32 %v550, 0.0
    %v599 = vmax.f32 %v555, 0.0
    %v600 = vmax.f32 %v558, 0.0
    %v601 = vmax.f32 %v563, 0.0
    %v602 = vmax.f32 %v566, 0.0
    %v603 = vmax.f32 %v571, 0.0
    %v604 = vmax.f32 %v574, 0.0
    %v605 = vmax.f32 %v579, 0.0
    %v606 = vmax.f32 %v582, 0.0
    %v607 = vmax.f32 %v587, 0.0
    %v608 = vmax.f32 %v590, 0.0
    %v609 = vld [vmem:[%s5] sm:$0xf]
    %v610 = vld [vmem:[%s5 + $0x4] sm:$0xf]
    %v611 = vld [vmem:[%s5 + $0x8] sm:$0xf]
    %v612 = vld [vmem:[%s5 + $0xc] sm:$0xf]
    %v613 = vld [vmem:[%s5 + $0x10] sm:$0xf]
    %v614 = vld [vmem:[%s5 + $0x14] sm:$0xf]
    %v615 = vld [vmem:[%s5 + $0x18] sm:$0xf]
    %v616 = vld [vmem:[%s5 + $0x1c] sm:$0xf]
    %v617 = vld [vmem:[%s5 + $0x20] sm:$0xf]
    %v618 = vld [vmem:[%s5 + $0x24] sm:$0xf]
    %v619 = vld [vmem:[%s5 + $0x28] sm:$0xf]
    %v620 = vld [vmem:[%s5 + $0x2c] sm:$0xf]
    %v621 = vld [vmem:[%s5 + $0x30] sm:$0xf]
    %v622 = vld [vmem:[%s5 + $0x34] sm:$0xf]
    %v623 = vld [vmem:[%s5 + $0x38] sm:$0xf]
    %v624 = vld [vmem:[%s5 + $0x3c] sm:$0xf]
    %v625 = vpack.c.bf16 %v594, %v593
    %v626 = vpack.c.bf16 %v596, %v595
    %v627 = vpack.c.bf16 %v598, %v597
    %v628 = vpack.c.bf16 %v600, %v599
    %v629 = vpack.c.bf16 %v602, %v601
    %v630 = vpack.c.bf16 %v604, %v603
    %v631 = vpack.c.bf16 %v606, %v605
    %v632 = vpack.c.bf16 %v608, %v607
    %v633 = vld [vmem:[%s6] sm:$0xff]
    %v634 = vld [vmem:[%s6 + $0x8] sm:$0xff]
    %v635 = vld [vmem:[%s6 + $0x10] sm:$0xff]
    %v636 = vld [vmem:[%s6 + $0x18] sm:$0xff]
    %v637 = vld [vmem:[%s6 + $0x20] sm:$0xff]
    %v638 = vld [vmem:[%s6 + $0x28] sm:$0xff]
    %v639 = vld [vmem:[%s6 + $0x30] sm:$0xff]
    %v640 = vld [vmem:[%s6 + $0x38] sm:$0xff]
    %v641 = vld [vmem:[%s6 + $0x40] sm:$0xff]
    %v642 = vld [vmem:[%s6 + $0x48] sm:$0xff]
    %v643 = vld [vmem:[%s6 + $0x50] sm:$0xff]
    %v644 = vld [vmem:[%s6 + $0x58] sm:$0xff]
    %v645 = vld [vmem:[%s6 + $0x60] sm:$0xff]
    %v646 = vld [vmem:[%s6 + $0x68] sm:$0xff]
    %v647 = vld [vmem:[%s6 + $0x70] sm:$0xff]
    %v648 = vld [vmem:[%s6 + $0x78] sm:$0xff]
    %650 = vset.pattern.permute.xlu0 0
    %651 = vperm.xlu0 %650, %v633
    %v652 = vpop.permute.xlu0 %651
    %655 = vset.pattern.permute.xlu0 0
    %656 = vperm.xlu0 %655, %v634
    %v657 = vpop.permute.xlu0 %656
    %660 = vset.pattern.permute.xlu0 0
    %661 = vperm.xlu0 %660, %v635
    %v662 = vpop.permute.xlu0 %661
    %665 = vset.pattern.permute.xlu0 0
    %666 = vperm.xlu0 %665, %v636
    %v667 = vpop.permute.xlu0 %666
    %670 = vset.pattern.permute.xlu0 0
    %671 = vperm.xlu0 %670, %v637
    %v672 = vpop.permute.xlu0 %671
    %675 = vset.pattern.permute.xlu0 0
    %676 = vperm.xlu0 %675, %v638
    %v677 = vpop.permute.xlu0 %676
    %680 = vset.pattern.permute.xlu0 0
    %681 = vperm.xlu0 %680, %v639
    %v682 = vpop.permute.xlu0 %681
    %685 = vset.pattern.permute.xlu0 0
    %686 = vperm.xlu0 %685, %v640
    %v687 = vpop.permute.xlu0 %686
    %690 = vset.pattern.permute.xlu0 0
    %691 = vperm.xlu0 %690, %v641
    %v692 = vpop.permute.xlu0 %691
    %695 = vset.pattern.permute.xlu0 0
    %696 = vperm.xlu0 %695, %v642
    %v697 = vpop.permute.xlu0 %696
    %700 = vset.pattern.permute.xlu0 0
    %701 = vperm.xlu0 %700, %v643
    %v702 = vpop.permute.xlu0 %701
    %705 = vset.pattern.permute.xlu0 0
    %706 = vperm.xlu0 %705, %v644
    %v707 = vpop.permute.xlu0 %706
    %710 = vset.pattern.permute.xlu0 0
    %711 = vperm.xlu0 %710, %v645
    %v712 = vpop.permute.xlu0 %711
    %715 = vset.pattern.permute.xlu0 0
    %716 = vperm.xlu0 %715, %v646
    %v717 = vpop.permute.xlu0 %716
    %720 = vset.pattern.permute.xlu0 0
    %721 = vperm.xlu0 %720, %v647
    %v722 = vpop.permute.xlu0 %721
    %725 = vset.pattern.permute.xlu0 0
    %726 = vperm.xlu0 %725, %v648
    %v727 = vpop.permute.xlu0 %726
    %v745 = vunpack.c.l.b16 %v609
    %v746 = vunpack.c.l.b16 %v610
    %v747 = vunpack.c.l.b16 %v611
    %v748 = vunpack.c.l.b16 %v612
    %v749 = vunpack.c.l.b16 %v613
    %v750 = vunpack.c.l.b16 %v614
    %v751 = vunpack.c.l.b16 %v615
    %v752 = vunpack.c.l.b16 %v616
    %v753 = vunpack.c.l.b16 %v617
    %v754 = vunpack.c.l.b16 %v618
    %v755 = vunpack.c.l.b16 %v619
    %v756 = vunpack.c.l.b16 %v620
    %v757 = vunpack.c.l.b16 %v621
    %v758 = vunpack.c.l.b16 %v622
    %v759 = vunpack.c.l.b16 %v623
    %v760 = vunpack.c.l.b16 %v624
    %v761 = vpack.c.b16 %v746, %v745
    %v762 = vpack.c.b16 %v748, %v747
    %v763 = vpack.c.b16 %v750, %v749
    %v764 = vpack.c.b16 %v752, %v751
    %v765 = vpack.c.b16 %v754, %v753
    %v766 = vpack.c.b16 %v756, %v755
    %v767 = vpack.c.b16 %v758, %v757
    %v768 = vpack.c.b16 %v760, %v759
    %777 = vmatprep.subr.bf16.mxu0 0
    %778 = vmatpush1.bf16.msra.mxu0 %v625
    %779 = vmatprep.subr.bf16.mxu0 0
    %780 = vmatpush1.bf16.msra.mxu0 %v626
    %781 = vmatprep.subr.bf16.mxu0 0
    %782 = vmatpush1.bf16.msra.mxu0 %v627
    %783 = vmatprep.subr.bf16.mxu0 0
    %784 = vmatpush1.bf16.msra.mxu0 %v628
    %785 = vmatprep.subr.bf16.mxu0 0
    %786 = vmatpush1.bf16.msra.mxu0 %v629
    %787 = vmatprep.subr.bf16.mxu0 0
    %788 = vmatpush1.bf16.msra.mxu0 %v630
    %789 = vmatprep.subr.bf16.mxu0 0
    %790 = vmatpush1.bf16.msra.mxu0 %v631
    %791 = vmatprep.subr.bf16.mxu0 0
    %792 = vmatpush1.bf16.msra.mxu0 %v632
    %793 = vmatprep.subr.bf16.mxu0 0
    %794 = vmatpush1.bf16.msra.mxu0 0
    %795 = vmatprep.subr.bf16.mxu0 0
    %796 = vmatpush1.bf16.msra.mxu0 0
    %797 = vmatprep.subr.bf16.mxu0 0
    %798 = vmatpush1.bf16.msra.mxu0 0
    %799 = vmatprep.subr.bf16.mxu0 0
    %800 = vmatpush1.bf16.msra.mxu0 0
    %801 = vmatprep.subr.bf16.mxu0 0
    %802 = vmatpush1.bf16.msra.mxu0 0
    %803 = vmatprep.subr.bf16.mxu0 0
    %804 = vmatpush1.bf16.msra.mxu0 0
    %805 = vmatprep.subr.bf16.mxu0 0
    %806 = vmatpush1.bf16.msra.mxu0 0
    %807 = vmatprep.subr.bf16.mxu0 0
    %808 = vmatpush1.bf16.msra.mxu0 0
    %809 = vmatprep.mubr.bf16.mxu0 0
    %810 = vmatmul.mubr.bf16.gmra.mrb[0].mxu0 %v761
    %v811 = vpop.f32.mrb[0].mxu0
    %v812 = vadd.f32 %v652, %v811
    %v813 = vpop.f32.mrb[0].mxu0
    %v814 = vpop.f32.mrb[0].mxu0
    %v815 = vadd.f32 %v657, %v814
    %v816 = vpop.f32.mrb[0].mxu0
    %817 = vmatprep.mubr.bf16.mxu0 0
    %818 = vmatmul.mubr.bf16.gmra.mrb[0].mxu0 %v762
    %v819 = vpop.f32.mrb[0].mxu0
    %v820 = vadd.f32 %v662, %v819
    %v821 = vpop.f32.mrb[0].mxu0
    %v822 = vpop.f32.mrb[0].mxu0
    %v823 = vadd.f32 %v667, %v822
    %v824 = vpop.f32.mrb[0].mxu0
    %825 = vmatprep.mubr.bf16.mxu0 0
    %826 = vmatmul.mubr.bf16.gmra.mrb[0].mxu0 %v763
    %v827 = vpop.f32.mrb[0].mxu0
    %v828 = vadd.f32 %v672, %v827
    %v829 = vpop.f32.mrb[0].mxu0
    %v830 = vpop.f32.mrb[0].mxu0
    %v831 = vadd.f32 %v677, %v830
    %v832 = vpop.f32.mrb[0].mxu0
    %833 = vmatprep.mubr.bf16.mxu0 0
    %834 = vmatmul.mubr.bf16.gmra.mrb[0].mxu0 %v764
    %v835 = vpop.f32.mrb[0].mxu0
    %v836 = vadd.f32 %v682, %v835
    %v837 = vpop.f32.mrb[0].mxu0
    %v838 = vpop.f32.mrb[0].mxu0
    %v839 = vadd.f32 %v687, %v838
    %v840 = vpop.f32.mrb[0].mxu0
    %841 = vmatprep.mubr.bf16.mxu0 0
    %842 = vmatmul.mubr.bf16.gmra.mrb[0].mxu0 %v765
    %v843 = vpop.f32.mrb[0].mxu0
    %v844 = vadd.f32 %v692, %v843
    %v845 = vpop.f32.mrb[0].mxu0
    %v846 = vpop.f32.mrb[0].mxu0
    %v847 = vadd.f32 %v697, %v846
    %v848 = vpop.f32.mrb[0].mxu0
    %849 = vmatprep.mubr.bf16.mxu0 0
    %850 = vmatmul.mubr.bf16.gmra.mrb[0].mxu0 %v766
    %v851 = vpop.f32.mrb[0].mxu0
    %v852 = vadd.f32 %v702, %v851
    %v853 = vpop.f32.mrb[0].mxu0
    %v854 = vpop.f32.mrb[0].mxu0
    %v855 = vadd.f32 %v707, %v854
    %v856 = vpop.f32.mrb[0].mxu0
    %857 = vmatprep.mubr.bf16.mxu0 0
    %858 = vmatmul.mubr.bf16.gmra.mrb[0].mxu0 %v767
    %v859 = vpop.f32.mrb[0].mxu0
    %v860 = vadd.f32 %v712, %v859
    %v861 = vpop.f32.mrb[0].mxu0
    %v862 = vpop.f32.mrb[0].mxu0
    %v863 = vadd.f32 %v717, %v862
    %v864 = vpop.f32.mrb[0].mxu0
    %865 = vmatprep.mubr.bf16.mxu0 0
    %866 = vmatmul.mubr.bf16.gmra.mrb[0].mxu0 %v768
    %v867 = vpop.f32.mrb[0].mxu0
    %v868 = vadd.f32 %v722, %v867
    %v869 = vpop.f32.mrb[0].mxu0
    %v870 = vpop.f32.mrb[0].mxu0
    %v871 = vadd.f32 %v727, %v870
    %v872 = vpop.f32.mrb[0].mxu0
    %873 = vdwg.mxu0
    %v874 = vmax.f32 %v812, 0.0
    %v875 = vmax.f32 %v815, 0.0
    %v876 = vmax.f32 %v820, 0.0
    %v877 = vmax.f32 %v823, 0.0
    %v878 = vmax.f32 %v828, 0.0
    %v879 = vmax.f32 %v831, 0.0
    %v880 = vmax.f32 %v836, 0.0
    %v881 = vmax.f32 %v839, 0.0
    %v882 = vmax.f32 %v844, 0.0
    %v883 = vmax.f32 %v847, 0.0
    %v884 = vmax.f32 %v852, 0.0
    %v885 = vmax.f32 %v855, 0.0
    %v886 = vmax.f32 %v860, 0.0
    %v887 = vmax.f32 %v863, 0.0
    %v888 = vmax.f32 %v868, 0.0
    %v889 = vmax.f32 %v871, 0.0
    %v890 = vld [vmem:[%s7] sm:$0xf]
    %v891 = vpack.c.bf16 %v875, %v874
    %v892 = vpack.c.bf16 %v877, %v876
    %v893 = vpack.c.bf16 %v879, %v878
    %v894 = vpack.c.bf16 %v881, %v880
    %v895 = vpack.c.bf16 %v883, %v882
    %v896 = vpack.c.bf16 %v885, %v884
    %v897 = vpack.c.bf16 %v887, %v886
    %v898 = vpack.c.bf16 %v889, %v888
    %899 = vmatprep.subr.bf16.mxu0 0
    %900 = vmatpush1.bf16.msra.mxu0 %v891
    %901 = vmatprep.subr.bf16.mxu0 0
    %902 = vmatpush1.bf16.msra.mxu0 %v892
    %903 = vmatprep.subr.bf16.mxu0 0
    %904 = vmatpush1.bf16.msra.mxu0 %v893
    %905 = vmatprep.subr.bf16.mxu0 0
    %906 = vmatpush1.bf16.msra.mxu0 %v894
    %907 = vmatprep.subr.bf16.mxu0 0
    %908 = vmatpush1.bf16.msra.mxu0 %v895
    %909 = vmatprep.subr.bf16.mxu0 0
    %910 = vmatpush1.bf16.msra.mxu0 %v896
    %911 = vmatprep.subr.bf16.mxu0 0
    %912 = vmatpush1.bf16.msra.mxu0 %v897
    %913 = vmatprep.subr.bf16.mxu0 0
    %914 = vmatpush1.bf16.msra.mxu0 %v898
    %915 = vmatprep.subr.bf16.mxu0 0
    %916 = vmatpush1.bf16.msra.mxu0 0
    %917 = vmatprep.subr.bf16.mxu0 0
    %918 = vmatpush1.bf16.msra.mxu0 0
    %919 = vmatprep.subr.bf16.mxu0 0
    %920 = vmatpush1.bf16.msra.mxu0 0
    %921 = vmatprep.subr.bf16.mxu0 0
    %922 = vmatpush1.bf16.msra.mxu0 0
    %923 = vmatprep.subr.bf16.mxu0 0
    %924 = vmatpush1.bf16.msra.mxu0 0
    %925 = vmatprep.subr.bf16.mxu0 0
    %926 = vmatpush1.bf16.msra.mxu0 0
    %927 = vmatprep.subr.bf16.mxu0 0
    %928 = vmatpush1.bf16.msra.mxu0 0
    %929 = vmatprep.subr.bf16.mxu0 0
    %930 = vmatpush1.bf16.msra.mxu0 0
    %931 = vmatprep.mubr.bf16.mxu0 0
    %932 = vmatmul.mubr.bf16.gmra.mrb[0].mxu0 %v890
    %v933 = vpop.f32.mrb[0].mxu0
    %v934 = vadd.f32 0.0, %v933
    %v935 = vpop.f32.mrb[0].mxu0
    %v936 = vpop.f32.mrb[0].mxu0
    %v937 = vpop.f32.mrb[0].mxu0
    %938 = vdwg.mxu0
    %s939 = sld [smem:[#allocation2]]
    %v940 = vstv %s939
    %v941 = vadd.f32 %v934, %v940
    %v942 = vtanh.pop %v941
    %943 = vst [vmem:[#allocation3] sm:$0x1] %v942
    // Predicated region
    $region38: #{tpu_custom_call.1} parent=1 // pred_check
      _
    $region39: #{tpu_custom_call.1} parent=1 // pred_check_branch
      %945 = sbr.rel (0) target = $region41
    $region40: #{tpu_custom_call.1} parent=1 // pred_region
      %s947 = ssub.s32 16, 16
      %948 = vsyncadd [#allocation4], %s947
      %s950 = sshll.u32 [#allocation3], 4
      %s951 = int_to_ptr.vmem [resolvable:$true] %s950
      %953 = dma.vmem_to_hbm [thread:$0]  %s951, 16, %s9, [#allocation4]
    $region41: #{tpu_custom_call.1} parent=1 // pred_fallthru
      _
    // Predicated region
    $region42: #{tpu_custom_call.1} parent=1 // pred_check
      _
    $region43: #{tpu_custom_call.1} parent=1 // pred_check_branch
      %955 = sbr.rel (0) target = $region45
    $region44: #{tpu_custom_call.1} parent=1 // pred_region
      %956 = dma.done [#allocation4], 16
    $region45: #{tpu_custom_call.1} parent=1 // pred_fallthru
      _
    %957 = vsyncpa [#allocation4], 1

</llo_original>
